<compile_context>
chip_gen: v7x
topology: tpu7x:2x2x1
jax: 0.10.0
libtpu: 0.0.40
codegen_flags: <defaults>
</compile_context>

<pallas_src>
import functools

import jax
import jax.numpy as jnp
from jax.experimental import pallas as pl
from jax.experimental.pallas import tpu as pltpu

_NEG_SLOPE = 0.01  # PyTorch nn.LeakyReLU default


def _round_up(n, m):
    return ((n + m - 1) // m) * m


# ------------------------------- Pallas kernel -------------------------------

def _mlp_autoencoder_kernel(x_ref, w_ref, b_ref, o_ref, *, layer_specs):
    """Fused 7-layer (8 Linear, latent pair folded) MLP autoencoder on one batch tile.

    x_ref : (TB, input_dim)  f32   input tile
    w_ref : (rows, Lmax)     bf16  all weights, layer i at rows [off_i, off_i+cin_i), cols [0, cout_i)
    b_ref : (8, Lmax)        f32   biases, layer i in row i, cols [0, cout_i)
    o_ref : (TB, input_dim)  f32   output tile
    layer_specs : static tuple of (row_off, cin, cout, apply_leaky_relu)
    """
    h = x_ref[...].astype(jnp.float32)
    for i, (off, cin, cout, act) in enumerate(layer_specs):
        w = w_ref[off:off + cin, 0:cout]                 # static slice, bf16 (cin, cout)
        b = b_ref[i:i + 1, 0:cout]                       # static slice, f32  (1, cout)
        # bf16 x bf16 on the MXU, f32 accumulation; bias-add / activation in f32 on VPU.
        h = jnp.dot(h.astype(jnp.bfloat16), w, preferred_element_type=jnp.float32) + b
        if act:
            h = jnp.where(h > 0, h, _NEG_SLOPE * h)
    o_ref[...] = h.astype(o_ref.dtype)


def autoencoder_forward(x, w_pack, b_pack, layer_specs, *, row_tile=1024):
    """x: (B, input_dim) f32 -> (B, input_dim) f32."""
    B, D = x.shape
    assert layer_specs[0][1] == D, "input_dim mismatch"

    # Batch tile: grows with B (up to row_tile), multiple of 8 sublanes, and kept at
    # <= ceil(B/2) so there are >= 2 grid tiles whenever B > 8 (both v7x TCs get work).
    tb = max(8, min(row_tile, _round_up(pl.cdiv(B, 2), 8)))
    grid = (pl.cdiv(B, tb),)   # no input padding / output slicing: tail rows are masked

    kernel = functools.partial(_mlp_autoencoder_kernel, layer_specs=layer_specs)
    return pl.pallas_call(
        kernel,
        out_shape=jax.ShapeDtypeStruct((B, D), x.dtype),
        grid=grid,
        in_specs=[
            pl.BlockSpec((tb, D), lambda i: (i, 0)),          # streamed input tile
            pl.BlockSpec(w_pack.shape, lambda i: (0, 0)),     # VMEM-resident packed weights
            pl.BlockSpec(b_pack.shape, lambda i: (0, 0)),     # VMEM-resident packed biases
        ],
        out_specs=pl.BlockSpec((tb, D), lambda i: (i, 0)),
        compiler_params=pltpu.CompilerParams(
            dimension_semantics=("parallel",),  # shard batch tiles across TCs (v7x)
        ),
    )(x, w_pack, b_pack)


# ----------------------------- parameter handling -----------------------------

_LAYER_DIMS = lambda input_dim, latent_dim: [
    (input_dim, 128), (128, 64), (64, 32), (32, latent_dim),   # encoder
    (latent_dim, 32), (32, 64), (64, 128), (128, input_dim),   # decoder
]


def _uniform(key, shape, fan_in):
    bound = 1.0 / jnp.sqrt(jnp.float32(fan_in))
    return jax.random.uniform(key, shape, jnp.float32, -bound, bound)


def init_params(key, input_dim, latent_dim=20):
    """Synthetic parameters in PyTorch-native layout: W (out, in), b (out,)."""
    dims = _LAYER_DIMS(input_dim, latent_dim)
    keys = jax.random.split(key, 2 * len(dims))
    params = []
    for li, (cin, cout) in enumerate(dims):
        w = _uniform(keys[2 * li], (cout, cin), cin)      # torch Linear weight layout
        b = _uniform(keys[2 * li + 1], (cout,), cin)
        params.append((w, b))
    return params


def prepare_kernel_params(params):
    """One-time prep: transpose to (in,out), fold the activation-free latent pair,
    pack all weights/biases into two VMEM-resident buffers, emit static layer specs."""
    ws = [jnp.transpose(w).astype(jnp.float32) for w, _ in params]   # (in, out)
    bs = [b.astype(jnp.float32) for _, b in params]

    # Fold encoder-last (Linear(32,latent)) with decoder-first (Linear(latent,32)):
    # no activation between them, so  h @ W3 + b3  then  @ W4 + b4  ==  h @ (W3@W4) + (b3@W4 + b4).
    w_f = ws[3] @ ws[4]                       # (32, 32)
    b_f = bs[3] @ ws[4] + bs[4]               # (32,)
    ws = ws[:3] + [w_f] + ws[5:]
    bs = bs[:3] + [b_f] + bs[5:]
    n = len(ws)                               # 7

    lmax = _round_up(max(w.shape[1] for w in ws), 128)    # lane-padded column count

    row_offs, total = [], 0
    for w in ws:
        row_offs.append(total)
        total += _round_up(w.shape[0], 8)                 # sublane-aligned row offsets

    w_pack = jnp.zeros((total, lmax), jnp.float32)
    for off, w in zip(row_offs, ws):
        w_pack = w_pack.at[off:off + w.shape[0], :w.shape[1]].set(w)
    w_pack = w_pack.astype(jnp.bfloat16)                  # bf16 MXU operands

    b_pack = jnp.zeros((_round_up(n, 8), lmax), jnp.float32)
    for i, b in enumerate(bs):
        b_pack = b_pack.at[i, :b.shape[0]].set(b)

    # LeakyReLU after every layer except the very last (the folded layer keeps the
    # activation that originally followed Linear(latent, 32)).
    layer_specs = tuple(
        (row_offs[i], ws[i].shape[0], ws[i].shape[1], i != n - 1) for i in range(n)
    )
    return w_pack, b_pack, layer_specs


# ------------------------------ pure-JAX reference ----------------------------

def reference_forward(x, params):
    """Unfolded, f32, PyTorch-Linear-semantics reference (8 layers)."""
    h = x
    n = len(params)
    for i, (w, b) in enumerate(params):
        h = h @ w.T + b
        if i not in (3, n - 1):
            h = jnp.where(h > 0, h, _NEG_SLOPE * h)
    return h


# ------------------------------------ main ------------------------------------

if __name__ == "__main__":
    key = jax.random.PRNGKey(0)
    k_param, k_x = jax.random.split(key)

    INPUT_DIM, LATENT_DIM = 128, 20
    B = 64                                    # small test -> tb=32, grid=(2,), no ragged tile

    params = init_params(k_param, INPUT_DIM, LATENT_DIM)
    w_pack, b_pack, layer_specs = prepare_kernel_params(params)

    x = jax.random.normal(k_x, (B, INPUT_DIM), jnp.float32)

    out = jax.block_until_ready(autoencoder_forward(x, w_pack, b_pack, layer_specs))

    ref = reference_forward(x, params)
    assert out.shape == (B, INPUT_DIM)
    max_err = float(jnp.max(jnp.abs(out - ref)))
    # bf16 matmul operands + folded latent pair reassociate slightly -> loosened tolerance.
    assert jnp.allclose(out, ref, atol=2e-2, rtol=5e-2), max_err

    print("KERNEL_OK")
</pallas_src>

<mosaic_0001>
module attributes {stable_mosaic.version = 11 : i64} {
  func.func @_mlp_autoencoder_kernel(%arg0: i32, %arg1: memref<32x128xf32, #tpu.memory_space<vmem>>, %arg2: memref<576x128xbf16, #tpu.memory_space<vmem>>, %arg3: memref<8x128xf32, #tpu.memory_space<vmem>>, %arg4: memref<32x128xf32, #tpu.memory_space<vmem>>) attributes {dimension_semantics = [#tpu.dimension_semantics<parallel>], iteration_bounds = array<i64: 2>, scalar_prefetch = 0 : i64, scratch_operands = 0 : i64, tpu.core_type = #tpu.core_type<tc>, window_params = [{transform_indices = @transform_0, window_bounds = array<i64: 32, 128>}, {pipeline_mode = #tpu.pipeline_mode<synchronous>, transform_indices = @transform_1, window_bounds = array<i64: 576, 128>}, {pipeline_mode = #tpu.pipeline_mode<synchronous>, transform_indices = @transform_2, window_bounds = array<i64: 8, 128>}, {transform_indices = @transform_3, window_bounds = array<i64: 32, 128>}]} {
    %c0 = arith.constant 0 : index
    %c0_0 = arith.constant 0 : index
    %0 = vector.load %arg1[%c0, %c0_0] : memref<32x128xf32, #tpu.memory_space<vmem>>, vector<32x128xf32>
    %c0_1 = arith.constant 0 : index
    %c0_2 = arith.constant 0 : index
    %1 = vector.load %arg2[%c0_1, %c0_2] : memref<576x128xbf16, #tpu.memory_space<vmem>>, vector<128x128xbf16>
    %c0_3 = arith.constant 0 : index
    %c0_4 = arith.constant 0 : index
    %2 = vector.load %arg3[%c0_3, %c0_4] : memref<8x128xf32, #tpu.memory_space<vmem>>, vector<1x128xf32>
    %3 = arith.truncf %0 : vector<32x128xf32> to vector<32x128xbf16>
    %cst = arith.constant dense<0.000000e+00> : vector<32x128xf32>
    %4 = tpu.matmul %3, %1, %cst {dimension_numbers = #tpu.dot_dimension_numbers<[1], [0], [0], [1], [0, 0, 1, 1], [], []>} : vector<32x128xbf16>, vector<128x128xbf16>, vector<32x128xf32> -> vector<32x128xf32>
    %5 = vector.broadcast %2 : vector<1x128xf32> to vector<32x128xf32>
    %6 = arith.addf %4, %5 : vector<32x128xf32>
    %cst_5 = arith.constant 0.000000e+00 : f32
    %7 = vector.broadcast %cst_5 : f32 to vector<32x128xf32>
    %8 = arith.cmpf ogt, %6, %7 : vector<32x128xf32>
    %cst_6 = arith.constant 0.00999999977 : f32
    %9 = vector.broadcast %cst_6 : f32 to vector<32x128xf32>
    %10 = arith.mulf %9, %6 : vector<32x128xf32>
    %11 = arith.select %8, %6, %10 : vector<32x128xi1>, vector<32x128xf32>
    %c128 = arith.constant 128 : index
    %c0_7 = arith.constant 0 : index
    %12 = vector.load %arg2[%c128, %c0_7] : memref<576x128xbf16, #tpu.memory_space<vmem>>, vector<128x64xbf16>
    %c1 = arith.constant 1 : index
    %c0_8 = arith.constant 0 : index
    %13 = vector.load %arg3[%c1, %c0_8] : memref<8x128xf32, #tpu.memory_space<vmem>>, vector<1x64xf32>
    %14 = arith.truncf %11 : vector<32x128xf32> to vector<32x128xbf16>
    %cst_9 = arith.constant dense<0.000000e+00> : vector<32x64xf32>
    %15 = tpu.matmul %14, %12, %cst_9 {dimension_numbers = #tpu.dot_dimension_numbers<[1], [0], [0], [1], [0, 0, 1, 1], [], []>} : vector<32x128xbf16>, vector<128x64xbf16>, vector<32x64xf32> -> vector<32x64xf32>
    %16 = vector.broadcast %13 : vector<1x64xf32> to vector<32x64xf32>
    %17 = arith.addf %15, %16 : vector<32x64xf32>
    %cst_10 = arith.constant 0.000000e+00 : f32
    %18 = vector.broadcast %cst_10 : f32 to vector<32x64xf32>
    %19 = arith.cmpf ogt, %17, %18 : vector<32x64xf32>
    %cst_11 = arith.constant 0.00999999977 : f32
    %20 = vector.broadcast %cst_11 : f32 to vector<32x64xf32>
    %21 = arith.mulf %20, %17 : vector<32x64xf32>
    %22 = arith.select %19, %17, %21 : vector<32x64xi1>, vector<32x64xf32>
    %c256 = arith.constant 256 : index
    %c0_12 = arith.constant 0 : index
    %23 = vector.load %arg2[%c256, %c0_12] : memref<576x128xbf16, #tpu.memory_space<vmem>>, vector<64x32xbf16>
    %c2 = arith.constant 2 : index
    %c0_13 = arith.constant 0 : index
    %24 = vector.load %arg3[%c2, %c0_13] : memref<8x128xf32, #tpu.memory_space<vmem>>, vector<1x32xf32>
    %25 = arith.truncf %22 : vector<32x64xf32> to vector<32x64xbf16>
    %cst_14 = arith.constant dense<0.000000e+00> : vector<32x32xf32>
    %26 = tpu.matmul %25, %23, %cst_14 {dimension_numbers = #tpu.dot_dimension_numbers<[1], [0], [0], [1], [0, 0, 1, 1], [], []>} : vector<32x64xbf16>, vector<64x32xbf16>, vector<32x32xf32> -> vector<32x32xf32>
    %27 = vector.broadcast %24 : vector<1x32xf32> to vector<32x32xf32>
    %28 = arith.addf %26, %27 : vector<32x32xf32>
    %cst_15 = arith.constant 0.000000e+00 : f32
    %29 = vector.broadcast %cst_15 : f32 to vector<32x32xf32>
    %30 = arith.cmpf ogt, %28, %29 : vector<32x32xf32>
    %cst_16 = arith.constant 0.00999999977 : f32
    %31 = vector.broadcast %cst_16 : f32 to vector<32x32xf32>
    %32 = arith.mulf %31, %28 : vector<32x32xf32>
    %33 = arith.select %30, %28, %32 : vector<32x32xi1>, vector<32x32xf32>
    %c320 = arith.constant 320 : index
    %c0_17 = arith.constant 0 : index
    %34 = vector.load %arg2[%c320, %c0_17] : memref<576x128xbf16, #tpu.memory_space<vmem>>, vector<32x32xbf16>
    %c3 = arith.constant 3 : index
    %c0_18 = arith.constant 0 : index
    %35 = vector.load %arg3[%c3, %c0_18] : memref<8x128xf32, #tpu.memory_space<vmem>>, vector<1x32xf32>
    %36 = arith.truncf %33 : vector<32x32xf32> to vector<32x32xbf16>
    %cst_19 = arith.constant dense<0.000000e+00> : vector<32x32xf32>
    %37 = tpu.matmul %36, %34, %cst_19 {dimension_numbers = #tpu.dot_dimension_numbers<[1], [0], [0], [1], [0, 0, 1, 1], [], []>} : vector<32x32xbf16>, vector<32x32xbf16>, vector<32x32xf32> -> vector<32x32xf32>
    %38 = vector.broadcast %35 : vector<1x32xf32> to vector<32x32xf32>
    %39 = arith.addf %37, %38 : vector<32x32xf32>
    %cst_20 = arith.constant 0.000000e+00 : f32
    %40 = vector.broadcast %cst_20 : f32 to vector<32x32xf32>
    %41 = arith.cmpf ogt, %39, %40 : vector<32x32xf32>
    %cst_21 = arith.constant 0.00999999977 : f32
    %42 = vector.broadcast %cst_21 : f32 to vector<32x32xf32>
    %43 = arith.mulf %42, %39 : vector<32x32xf32>
    %44 = arith.select %41, %39, %43 : vector<32x32xi1>, vector<32x32xf32>
    %c352 = arith.constant 352 : index
    %c0_22 = arith.constant 0 : index
    %45 = vector.load %arg2[%c352, %c0_22] : memref<576x128xbf16, #tpu.memory_space<vmem>>, vector<32x64xbf16>
    %c4 = arith.constant 4 : index
    %c0_23 = arith.constant 0 : index
    %46 = vector.load %arg3[%c4, %c0_23] : memref<8x128xf32, #tpu.memory_space<vmem>>, vector<1x64xf32>
    %47 = arith.truncf %44 : vector<32x32xf32> to vector<32x32xbf16>
    %cst_24 = arith.constant dense<0.000000e+00> : vector<32x64xf32>
    %48 = tpu.matmul %47, %45, %cst_24 {dimension_numbers = #tpu.dot_dimension_numbers<[1], [0], [0], [1], [0, 0, 1, 1], [], []>} : vector<32x32xbf16>, vector<32x64xbf16>, vector<32x64xf32> -> vector<32x64xf32>
    %49 = vector.broadcast %46 : vector<1x64xf32> to vector<32x64xf32>
    %50 = arith.addf %48, %49 : vector<32x64xf32>
    %cst_25 = arith.constant 0.000000e+00 : f32
    %51 = vector.broadcast %cst_25 : f32 to vector<32x64xf32>
    %52 = arith.cmpf ogt, %50, %51 : vector<32x64xf32>
    %cst_26 = arith.constant 0.00999999977 : f32
    %53 = vector.broadcast %cst_26 : f32 to vector<32x64xf32>
    %54 = arith.mulf %53, %50 : vector<32x64xf32>
    %55 = arith.select %52, %50, %54 : vector<32x64xi1>, vector<32x64xf32>
    %c384 = arith.constant 384 : index
    %c0_27 = arith.constant 0 : index
    %56 = vector.load %arg2[%c384, %c0_27] : memref<576x128xbf16, #tpu.memory_space<vmem>>, vector<64x128xbf16>
    %c5 = arith.constant 5 : index
    %c0_28 = arith.constant 0 : index
    %57 = vector.load %arg3[%c5, %c0_28] : memref<8x128xf32, #tpu.memory_space<vmem>>, vector<1x128xf32>
    %58 = arith.truncf %55 : vector<32x64xf32> to vector<32x64xbf16>
    %cst_29 = arith.constant dense<0.000000e+00> : vector<32x128xf32>
    %59 = tpu.matmul %58, %56, %cst_29 {dimension_numbers = #tpu.dot_dimension_numbers<[1], [0], [0], [1], [0, 0, 1, 1], [], []>} : vector<32x64xbf16>, vector<64x128xbf16>, vector<32x128xf32> -> vector<32x128xf32>
    %60 = vector.broadcast %57 : vector<1x128xf32> to vector<32x128xf32>
    %61 = arith.addf %59, %60 : vector<32x128xf32>
    %cst_30 = arith.constant 0.000000e+00 : f32
    %62 = vector.broadcast %cst_30 : f32 to vector<32x128xf32>
    %63 = arith.cmpf ogt, %61, %62 : vector<32x128xf32>
    %cst_31 = arith.constant 0.00999999977 : f32
    %64 = vector.broadcast %cst_31 : f32 to vector<32x128xf32>
    %65 = arith.mulf %64, %61 : vector<32x128xf32>
    %66 = arith.select %63, %61, %65 : vector<32x128xi1>, vector<32x128xf32>
    %c448 = arith.constant 448 : index
    %c0_32 = arith.constant 0 : index
    %67 = vector.load %arg2[%c448, %c0_32] : memref<576x128xbf16, #tpu.memory_space<vmem>>, vector<128x128xbf16>
    %c6 = arith.constant 6 : index
    %c0_33 = arith.constant 0 : index
    %68 = vector.load %arg3[%c6, %c0_33] : memref<8x128xf32, #tpu.memory_space<vmem>>, vector<1x128xf32>
    %69 = arith.truncf %66 : vector<32x128xf32> to vector<32x128xbf16>
    %cst_34 = arith.constant dense<0.000000e+00> : vector<32x128xf32>
    %70 = tpu.matmul %69, %67, %cst_34 {dimension_numbers = #tpu.dot_dimension_numbers<[1], [0], [0], [1], [0, 0, 1, 1], [], []>} : vector<32x128xbf16>, vector<128x128xbf16>, vector<32x128xf32> -> vector<32x128xf32>
    %71 = vector.broadcast %68 : vector<1x128xf32> to vector<32x128xf32>
    %72 = arith.addf %70, %71 : vector<32x128xf32>
    %c0_35 = arith.constant 0 : index
    %c0_36 = arith.constant 0 : index
    %73 = vector.load %arg4[%c0_35, %c0_36] : memref<32x128xf32, #tpu.memory_space<vmem>>, vector<32x128xf32>
    tpu.vector_store %arg4[%c0_35, %c0_36], %72 {strides = array<i32>} : memref<32x128xf32, #tpu.memory_space<vmem>>, vector<32x128xf32>,
    return
  }
  func.func @transform_0(%arg0: i32) -> (i32, i32) {
    %c0_i32 = arith.constant 0 : i32
    %c0_i32_0 = arith.constant 0 : i32
    return %arg0, %c0_i32 : i32, i32
  }
  func.func @transform_1(%arg0: i32) -> (i32, i32) {
    %c0_i32 = arith.constant 0 : i32
    %c0_i32_0 = arith.constant 0 : i32
    %c0_i32_1 = arith.constant 0 : i32
    return %c0_i32, %c0_i32_0 : i32, i32
  }
  func.func @transform_2(%arg0: i32) -> (i32, i32) {
    %c0_i32 = arith.constant 0 : i32
    %c0_i32_0 = arith.constant 0 : i32
    %c0_i32_1 = arith.constant 0 : i32
    return %c0_i32, %c0_i32_0 : i32, i32
  }
  func.func @transform_3(%arg0: i32) -> (i32, i32) {
    %c0_i32 = arith.constant 0 : i32
    %c0_i32_0 = arith.constant 0 : i32
    return %arg0, %c0_i32 : i32, i32
  }
}

</mosaic_0001>

<llo_original>
// kernel: tpu_custom_call.1
$region0: #{tpu_custom_call.1}
  #allocation0 [shape = 'u32[]', space=smem, size = 0x4, offset = 0x4, fixed_abs, tag = 'smem constant byte address 0x4 - core index']
  #allocation1 [shape = 'u32[144,128]{1,0:T(1,128)}', space=vmem, size = 0x12000, scoped, tag = 'internal scratch']
  %s0 = inlined_call_operand.hbm [shape: f32[64,128], index: 0, kind: input, shape index: {}]
  %s1 = inlined_call_operand.hbm [shape: bf16[576,128], index: 1, kind: input, shape index: {}]
  %s2 = inlined_call_operand.hbm [shape: f32[8,128], index: 2, kind: input, shape index: {}]
  %s3 = inlined_call_operand.hbm [shape: f32[64,128], index: 3, kind: output, shape index: {}]
  %s4 = sld [smem:[#allocation0]]
  $region57: #{tpu_custom_call.1} parent=0
    _
  %s6 = ssub.s32 1, %s4
  %s7 = scalar_select 0, %s6, %s4
  $region1: #{tpu_custom_call.1} parent=0
    #allocation2 [shape = 'u8[32768]{0}', space=vmem, size = 0x8000, scoped, tag = 'input window, operand 0']
    #allocation3 [shape = 's32[2]{0}', space=sflag, size = 0x8, scoped, tag = 'scoped memory for tpu_custom_call.1']
    #allocation4 [shape = 's32[2]{0}', space=sflag, size = 0x8, scoped, tag = 'scoped memory for tpu_custom_call.1']
    #allocation5 [shape = 'u8[147456]{0}', space=vmem, size = 0x24000, scoped, tag = 'input window, operand 1, single buffered']
    #allocation6 [shape = 's32[1]{0}', space=sflag, size = 0x4, scoped, tag = 'scoped memory for tpu_custom_call.1']
    #allocation7 [shape = 'u8[4096]{0}', space=vmem, size = 0x1000, scoped, tag = 'input window, operand 2, single buffered']
    #allocation8 [shape = 'u8[32768]{0}', space=vmem, size = 0x8000, scoped, tag = 'output window, operand 0']
    %8 = vsyncpa [#allocation3], 0
    %s9 = scalar_lea.sflag [#allocation3], 1
    %10 = vsyncpa %s9, 0
    %11 = vsyncpa [#allocation6], 0
    %12 = vsyncpa [#allocation4], 0
    %s13 = scalar_lea.sflag [#allocation4], 1
    %14 = vsyncpa %s13, 0
    loop: start=0, step=1, limit=4
    $region2: #{tpu_custom_call.1} parent=1 // loop_pre_header
      _
    $region3: #{tpu_custom_call.1} parent=1 // loop_header
      %s16 = sphi 0, %s20
      %p17 = scmp.ge.s32.totalorder %s16, 4
      %s26 = sphi 0, %s28
      %s29 = sphi 0, %s26
      %s30 = sphi 0, %s29
      %s46 = sphi 0, %s30
      %s50 = sphi 0, %s50
      %s52 = sphi 0, %s50
      %s53 = sphi 0, %s52
      %s67 = sphi 0, %s53
      %s71 = sphi 0, %s71
      %s73 = sphi 0, %s71
      %s74 = sphi 0, %s73
      %s88 = sphi 0, %s74
      %s94 = sphi 0, %s96
      %s97 = sphi 0, %s94
      %s98 = sphi 0, %s97
      %s114 = sphi 0, %s98
    $region4: #{tpu_custom_call.1} parent=1 // loop_header_branch
      %19 = sbr.rel (%p17) target = $region8
    $region5: #{tpu_custom_call.1} parent=1 // loop_body
      %s21 = ssub.s32 %s16, 1
      %s22 = ssub.s32 %s16, 2
      %s23 = sadd.s32 %s16, 1
      %s24 = ssub.s32 %s16, %s23
      %p25 = scmp.eq.s32.totalorder %s24, 0
      %s27 = sadd.s32 %s26, 1
      %s28 = scalar_select %p25, %s26, %s27
      %p31 = pneg %p25
      %p32 = scmp.eq.s32.totalorder %s16, 1
      %p33 = por %p31, %p32
      %p34 = scmp.ne.s32.totalorder %s26, %s29
      %p35 = scmp.eq.s32.totalorder %s16, 0
      %p36 = por %p34, %p35
      %p37 = scmp.ne.s32.totalorder %s26, %s29
      %p38 = scmp.eq.s32.totalorder %s21, 1
      %p39 = por %p37, %p38
      %p40 = scmp.ne.s32.totalorder %s29, %s30
      %p41 = scmp.eq.s32.totalorder %s21, 0
      %p42 = por %p40, %p41
      %p43 = scmp.ne.s32.totalorder %s29, %s30
      %p44 = scmp.eq.s32.totalorder %s22, 1
      %p45 = por %p43, %p44
      %p47 = scmp.ne.s32.totalorder %s30, %s46
      %p48 = scmp.eq.s32.totalorder %s22, 0
      %p49 = por %p47, %p48
      %s51 = sadd.s32 %s50, 1
      %p54 = scmp.eq.s32.totalorder %s16, 1
      %p55 = scmp.ne.s32.totalorder %s50, %s52
      %p56 = scmp.eq.s32.totalorder %s16, 0
      %p57 = por %p55, %p56
      %p58 = scmp.ne.s32.totalorder %s50, %s52
      %p59 = scmp.eq.s32.totalorder %s21, 1
      %p60 = por %p58, %p59
      %p61 = scmp.ne.s32.totalorder %s52, %s53
      %p62 = scmp.eq.s32.totalorder %s21, 0
      %p63 = por %p61, %p62
      %p64 = scmp.ne.s32.totalorder %s52, %s53
      %p65 = scmp.eq.s32.totalorder %s22, 1
      %p66 = por %p64, %p65
      %p68 = scmp.ne.s32.totalorder %s53, %s67
      %p69 = scmp.eq.s32.totalorder %s22, 0
      %p70 = por %p68, %p69
      %s72 = sadd.s32 %s71, 1
      %p75 = scmp.eq.s32.totalorder %s16, 1
      %p76 = scmp.ne.s32.totalorder %s71, %s73
      %p77 = scmp.eq.s32.totalorder %s16, 0
      %p78 = por %p76, %p77
      %p79 = scmp.ne.s32.totalorder %s71, %s73
      %p80 = scmp.eq.s32.totalorder %s21, 1
      %p81 = por %p79, %p80
      %p82 = scmp.ne.s32.totalorder %s73, %s74
      %p83 = scmp.eq.s32.totalorder %s21, 0
      %p84 = por %p82, %p83
      %p85 = scmp.ne.s32.totalorder %s73, %s74
      %p86 = scmp.eq.s32.totalorder %s22, 1
      %p87 = por %p85, %p86
      %p89 = scmp.ne.s32.totalorder %s74, %s88
      %p90 = scmp.eq.s32.totalorder %s22, 0
      %p91 = por %p89, %p90
      %s92 = ssub.s32 %s16, %s23
      %p93 = scmp.eq.s32.totalorder %s92, 0
      %s95 = sadd.s32 %s94, 1
      %s96 = scalar_select %p93, %s94, %s95
      %p99 = pneg %p93
      %p100 = scmp.eq.s32.totalorder %s16, 1
      %p101 = por %p99, %p100
      %p102 = scmp.ne.s32.totalorder %s94, %s97
      %p103 = scmp.eq.s32.totalorder %s16, 0
      %p104 = por %p102, %p103
      %p105 = scmp.ne.s32.totalorder %s94, %s97
      %p106 = scmp.eq.s32.totalorder %s21, 1
      %p107 = por %p105, %p106
      %p108 = scmp.ne.s32.totalorder %s97, %s98
      %p109 = scmp.eq.s32.totalorder %s21, 0
      %p110 = por %p108, %p109
      %p111 = scmp.ne.s32.totalorder %s97, %s98
      %p112 = scmp.eq.s32.totalorder %s22, 1
      %p113 = por %p111, %p112
      %p115 = scmp.ne.s32.totalorder %s98, %s114
      %p116 = scmp.eq.s32.totalorder %s22, 0
      %p117 = por %p115, %p116
      %p118 = scmp.le.s32.totalorder 1, %s16
      %p119 = scmp.lt.s32.totalorder %s16, 3
      %p120 = pnand %p118, %p119
      %p121 = pneg %p120
      // Predicated region
      $region9: #{tpu_custom_call.1} parent=5 // pred_check
        _
      $region10: #{tpu_custom_call.1} parent=5 // pred_check_branch
        %123 = sbr.rel (%p120) target = $region12
      $region11: #{tpu_custom_call.1} parent=5 // pred_region
        %s124 = ssub.s32 %s16, 1
        // Predicated region
        $region13: #{tpu_custom_call.1} parent=11 // pred_check
          %p125 = pneg %p63
        $region14: #{tpu_custom_call.1} parent=11 // pred_check_branch
          %127 = sbr.rel (%p125) target = $region16
        $region15: #{tpu_custom_call.1} parent=11 // pred_region
          %s129 = ssub.s32 4608, 4608
          %130 = vsyncadd [#allocation6], %s129
          %s131 = sshll.u32 [#allocation5], 4
          %s132 = int_to_ptr.vmem [resolvable:$true] %s131
          %137 = dma.hbm_to_vmem [thread:$0]  %s1, 4608, %s132, [#allocation6], 64, 64, 4
        $region16: #{tpu_custom_call.1} parent=11 // pred_fallthru
          _
        // Predicated region
        $region17: #{tpu_custom_call.1} parent=11 // pred_check
          %p138 = pneg %p84
        $region18: #{tpu_custom_call.1} parent=11 // pred_check_branch
          %140 = sbr.rel (%p138) target = $region20
        $region19: #{tpu_custom_call.1} parent=11 // pred_region
          %s142 = ssub.s32 128, 128
          %143 = vsyncadd [#allocation6], %s142
          %s145 = sshll.u32 [#allocation7], 4
          %s146 = int_to_ptr.vmem [resolvable:$true] %s145
          %148 = dma.hbm_to_vmem [thread:$0]  %s2, 128, %s146, [#allocation6]
        $region20: #{tpu_custom_call.1} parent=11 // pred_fallthru
          _
      $region12: #{tpu_custom_call.1} parent=5 // pred_fallthru
        _
      %p149 = scmp.lt.s32.totalorder %s16, 2
      // Predicated region
      $region21: #{tpu_custom_call.1} parent=5 // pred_check
        %p150 = pneg %p149
      $region22: #{tpu_custom_call.1} parent=5 // pred_check_branch
        %152 = sbr.rel (%p150) target = $region24
      $region23: #{tpu_custom_call.1} parent=5 // pred_region
        // Predicated region
        $region25: #{tpu_custom_call.1} parent=23 // pred_check
          %p153 = pneg %p36
        $region26: #{tpu_custom_call.1} parent=23 // pred_check_branch
          %155 = sbr.rel (%p153) target = $region28
        $region27: #{tpu_custom_call.1} parent=23 // pred_region
          %s156 = sand.u32 %s26, 1
          %s157 = scalar_lea.sflag [#allocation3], %s156
          %s158 = sand.u32 %s26, 1
          %s159 = smul.addr %s158, 32
          %s160 = scalar_lea.vmem [#allocation2], %s159
          %s161 = smul.u32 4, %s16
          %s163 = ssub.s32 512, 512
          %164 = vsyncadd %s157, %s163
          %s165 = smul.addr %s161, 128
          %s166 = scalar_lea.hbm %s0, %s165
          %s167 = sshll.u32 %s160, 4
          %s168 = int_to_ptr.vmem [resolvable:$true] %s167
          %173 = dma.hbm_to_vmem [thread:$0]  %s166, 512, %s168, %s157, 128, 128, 8
        $region28: #{tpu_custom_call.1} parent=23 // pred_fallthru
          _
      $region24: #{tpu_custom_call.1} parent=5 // pred_fallthru
        _
      %p174 = scmp.le.s32.totalorder 1, %s16
      %p175 = scmp.lt.s32.totalorder %s16, 3
      %p176 = pnand %p174, %p175
      %p177 = pneg %p176
      // Predicated region
      $region29: #{tpu_custom_call.1} parent=5 // pred_check
        _
      $region30: #{tpu_custom_call.1} parent=5 // pred_check_branch
        %179 = sbr.rel (%p176) target = $region32
      $region31: #{tpu_custom_call.1} parent=5 // pred_region
        %s180 = ssub.s32 %s16, 1
        %s181 = sand.u32 %s29, 1
        %s182 = scalar_lea.sflag [#allocation3], %s181
        %s183 = sand.u32 %s29, 1
        %s184 = smul.addr %s183, 32
        %s185 = scalar_lea.vmem [#allocation2], %s184
        // Predicated region
        $region33: #{tpu_custom_call.1} parent=31 // pred_check
          %p186 = pneg %p42
        $region34: #{tpu_custom_call.1} parent=31 // pred_check_branch
          %188 = sbr.rel (%p186) target = $region36
        $region35: #{tpu_custom_call.1} parent=31 // pred_region
          %189 = dma.done %s182, 512
        $region36: #{tpu_custom_call.1} parent=31 // pred_fallthru
          _
        // Predicated region
        $region37: #{tpu_custom_call.1} parent=31 // pred_check
          %p190 = pneg %p63
        $region38: #{tpu_custom_call.1} parent=31 // pred_check_branch
          %192 = sbr.rel (%p190) target = $region40
        $region39: #{tpu_custom_call.1} parent=31 // pred_region
          %193 = dma.done [#allocation6], 4608
        $region40: #{tpu_custom_call.1} parent=31 // pred_fallthru
          _
        // Predicated region
        $region41: #{tpu_custom_call.1} parent=31 // pred_check
          %p194 = pneg %p84
        $region42: #{tpu_custom_call.1} parent=31 // pred_check_branch
          %196 = sbr.rel (%p194) target = $region44
        $region43: #{tpu_custom_call.1} parent=31 // pred_region
          %197 = dma.done [#allocation6], 128
        $region44: #{tpu_custom_call.1} parent=31 // pred_fallthru
          _
        %s198 = sand.u32 %s29, 1
        %s199 = scalar_lea.sflag [#allocation3], %s198
        %s200 = sand.u32 %s29, 1
        %s201 = smul.addr %s200, 32
        %s202 = scalar_lea.vmem [#allocation2], %s201
        %p203 = pneg %p42
        %p204 = pneg %p39
        %p205 = pneg %p63
        %p206 = pneg %p60
        %p207 = pneg %p84
        %p208 = pneg %p81
        %p209 = pneg %p110
        %p210 = pneg %p107
        %s211 = sand.u32 %s97, 1
        %s212 = scalar_lea.sflag [#allocation4], %s211
        %s213 = sand.u32 %s97, 1
        %s214 = smul.addr %s213, 32
        %s215 = scalar_lea.vmem [#allocation8], %s214
        %s216 = smul.u32 4, %s21
        %s217 = smul.u32 4, %s21
        %v219 = vld [vmem:[%s185] sm:$0xff]
        %v220 = vld [vmem:[%s185 + $0x8] sm:$0xff]
        %v221 = vld [vmem:[%s185 + $0x10] sm:$0xff]
        %v222 = vld [vmem:[%s185 + $0x18] sm:$0xff]
        %v223 = vld [vmem:[#allocation5] sm:$0xf]
        %v224 = vld [vmem:[#allocation5 + $0x4] sm:$0xf]
        %v225 = vld [vmem:[#allocation5 + $0x8] sm:$0xf]
        %v226 = vld [vmem:[#allocation5 + $0xc] sm:$0xf]
        %v227 = vld [vmem:[#allocation5 + $0x10] sm:$0xf]
        %v228 = vld [vmem:[#allocation5 + $0x14] sm:$0xf]
        %v229 = vld [vmem:[#allocation5 + $0x18] sm:$0xf]
        %v230 = vld [vmem:[#allocation5 + $0x1c] sm:$0xf]
        %v231 = vld [vmem:[#allocation5 + $0x20] sm:$0xf]
        %v232 = vld [vmem:[#allocation5 + $0x24] sm:$0xf]
        %v233 = vld [vmem:[#allocation5 + $0x28] sm:$0xf]
        %v234 = vld [vmem:[#allocation5 + $0x2c] sm:$0xf]
        %v235 = vld [vmem:[#allocation5 + $0x30] sm:$0xf]
        %v236 = vld [vmem:[#allocation5 + $0x34] sm:$0xf]
        %v237 = vld [vmem:[#allocation5 + $0x38] sm:$0xf]
        %v238 = vld [vmem:[#allocation5 + $0x3c] sm:$0xf]
        %v239 = vld [vmem:[#allocation7] sm:$0x1]
        %v240 = vpack.c.bf16 %v220, %v219
        %v241 = vpack.c.bf16 %v222, %v221
        %v242 = vlaneseq
        %v243 = vshrl.u32 %v242, 7
        %v244 = vsub.s32 0, %v243
        %v245 = vrot.slane %v239, %v244
        %v262 = vunpack.c.l.b16 %v223
        %v263 = vunpack.c.l.b16 %v224
        %v264 = vunpack.c.l.b16 %v225
        %v265 = vunpack.c.l.b16 %v226
        %v266 = vunpack.c.l.b16 %v227
        %v267 = vunpack.c.l.b16 %v228
        %v268 = vunpack.c.l.b16 %v229
        %v269 = vunpack.c.l.b16 %v230
        %v270 = vunpack.c.l.b16 %v231
        %v271 = vunpack.c.l.b16 %v232
        %v272 = vunpack.c.l.b16 %v233
        %v273 = vunpack.c.l.b16 %v234
        %v274 = vunpack.c.l.b16 %v235
        %v275 = vunpack.c.l.b16 %v236
        %v276 = vunpack.c.l.b16 %v237
        %v277 = vunpack.c.l.b16 %v238
        %v278 = vpack.c.b16 %v263, %v262
        %v279 = vpack.c.b16 %v265, %v264
        %v280 = vpack.c.b16 %v267, %v266
        %v281 = vpack.c.b16 %v269, %v268
        %v282 = vpack.c.b16 %v271, %v270
        %v283 = vpack.c.b16 %v273, %v272
        %v284 = vpack.c.b16 %v275, %v274
        %v285 = vpack.c.b16 %v277, %v276
        %294 = vmatprep.subr.bf16.mxu0 0
        %295 = vmatpush1.bf16.msra.mxu0 %v278
        %296 = vmatprep.subr.bf16.mxu0 0
        %297 = vmatpush1.bf16.msra.mxu0 %v279
        %298 = vmatprep.subr.bf16.mxu0 0
        %299 = vmatpush1.bf16.msra.mxu0 %v280
        %300 = vmatprep.subr.bf16.mxu0 0
        %301 = vmatpush1.bf16.msra.mxu0 %v281
        %302 = vmatprep.subr.bf16.mxu0 0
        %303 = vmatpush1.bf16.msra.mxu0 %v282
        %304 = vmatprep.subr.bf16.mxu0 0
        %305 = vmatpush1.bf16.msra.mxu0 %v283
        %306 = vmatprep.subr.bf16.mxu0 0
        %307 = vmatpush1.bf16.msra.mxu0 %v284
        %308 = vmatprep.subr.bf16.mxu0 0
        %309 = vmatpush1.bf16.msra.mxu0 %v285
        %310 = vmatprep.subr.bf16.mxu0 0
        %311 = vmatpush1.bf16.msra.mxu0 0
        %312 = vmatprep.subr.bf16.mxu0 0
        %313 = vmatpush1.bf16.msra.mxu0 0
        %314 = vmatprep.subr.bf16.mxu0 0
        %315 = vmatpush1.bf16.msra.mxu0 0
        %316 = vmatprep.subr.bf16.mxu0 0
        %317 = vmatpush1.bf16.msra.mxu0 0
        %318 = vmatprep.subr.bf16.mxu0 0
        %319 = vmatpush1.bf16.msra.mxu0 0
        %320 = vmatprep.subr.bf16.mxu0 0
        %321 = vmatpush1.bf16.msra.mxu0 0
        %322 = vmatprep.subr.bf16.mxu0 0
        %323 = vmatpush1.bf16.msra.mxu0 0
        %324 = vmatprep.subr.bf16.mxu0 0
        %325 = vmatpush1.bf16.msra.mxu0 0
        %326 = vmatprep.mubr.bf16.mxu0 0
        %327 = vmatmul.mubr.bf16.gmra.mrb[0].mxu0 %v240
        %v328 = vpop.f32.mrb[0].mxu0
        %v329 = vadd.f32 %v245, %v328
        %v330 = vpop.f32.mrb[0].mxu0
        %v331 = vpop.f32.mrb[0].mxu0
        %v332 = vadd.f32 %v245, %v331
        %v333 = vpop.f32.mrb[0].mxu0
        %334 = vmatprep.mubr.bf16.mxu0 0
        %335 = vmatmul.mubr.bf16.gmra.mrb[0].mxu0 %v241
        %v336 = vpop.f32.mrb[0].mxu0
        %v337 = vadd.f32 %v245, %v336
        %v338 = vpop.f32.mrb[0].mxu0
        %v339 = vpop.f32.mrb[0].mxu0
        %v340 = vadd.f32 %v245, %v339
        %v341 = vpop.f32.mrb[0].mxu0
        %342 = vdwg.mxu0
        %vm343 = vcmp.gt.f32.partialorder %v329, 0.0
        %vm344 = vcmp.gt.f32.partialorder %v332, 0.0
        %vm345 = vcmp.gt.f32.partialorder %v337, 0.0
        %vm346 = vcmp.gt.f32.partialorder %v340, 0.0
        %v347 = vmul.f32 %v329, 0.01
        %v348 = vmul.f32 %v332, 0.01
        %v349 = vmul.f32 %v337, 0.01
        %v350 = vmul.f32 %v340, 0.01
        %v351 = vsel %vm343, %v329, %v347
        %v352 = vsel %vm344, %v332, %v348
        %v353 = vsel %vm345, %v337, %v349
        %v354 = vsel %vm346, %v340, %v350
        %v355 = vld [vmem:[#allocation5 + $0x40] sm:$0xf]
        %v356 = vld [vmem:[#allocation5 + $0x44] sm:$0xf]
        %v357 = vld [vmem:[#allocation5 + $0x48] sm:$0xf]
        %v358 = vld [vmem:[#allocation5 + $0x4c] sm:$0xf]
        %v359 = vld [vmem:[#allocation5 + $0x50] sm:$0xf]
        %v360 = vld [vmem:[#allocation5 + $0x54] sm:$0xf]
        %v361 = vld [vmem:[#allocation5 + $0x58] sm:$0xf]
        %v362 = vld [vmem:[#allocation5 + $0x5c] sm:$0xf]
        %v363 = vld [vmem:[#allocation5 + $0x60] sm:$0xf]
        %v364 = vld [vmem:[#allocation5 + $0x64] sm:$0xf]
        %v365 = vld [vmem:[#allocation5 + $0x68] sm:$0xf]
        %v366 = vld [vmem:[#allocation5 + $0x6c] sm:$0xf]
        %v367 = vld [vmem:[#allocation5 + $0x70] sm:$0xf]
        %v368 = vld [vmem:[#allocation5 + $0x74] sm:$0xf]
        %v369 = vld [vmem:[#allocation5 + $0x78] sm:$0xf]
        %v370 = vld [vmem:[#allocation5 + $0x7c] sm:$0xf]
        %v371 = vld [vmem:[#allocation7 + $0x1] sm:$0x1]
        %v372 = vpack.c.bf16 %v352, %v351
        %v373 = vpack.c.bf16 %v354, %v353
        %v374 = vlaneseq
        %v375 = vshrl.u32 %v374, 7
        %v376 = vsub.s32 0, %v375
        %v377 = vrot.slane %v371, %v376
        %v394 = vunpack.c.l.b16 %v355
        %v395 = vunpack.c.l.b16 %v356
        %v396 = vunpack.c.l.b16 %v357
        %v397 = vunpack.c.l.b16 %v358
        %v398 = vunpack.c.l.b16 %v359
        %v399 = vunpack.c.l.b16 %v360
        %v400 = vunpack.c.l.b16 %v361
        %v401 = vunpack.c.l.b16 %v362
        %v402 = vunpack.c.l.b16 %v363
        %v403 = vunpack.c.l.b16 %v364
        %v404 = vunpack.c.l.b16 %v365
        %v405 = vunpack.c.l.b16 %v366
        %v406 = vunpack.c.l.b16 %v367
        %v407 = vunpack.c.l.b16 %v368
        %v408 = vunpack.c.l.b16 %v369
        %v409 = vunpack.c.l.b16 %v370
        %v410 = vpack.c.b16 %v395, %v394
        %v411 = vpack.c.b16 %v397, %v396
        %v412 = vpack.c.b16 %v399, %v398
        %v413 = vpack.c.b16 %v401, %v400
        %v414 = vpack.c.b16 %v403, %v402
        %v415 = vpack.c.b16 %v405, %v404
        %v416 = vpack.c.b16 %v407, %v406
        %v417 = vpack.c.b16 %v409, %v408
        %426 = vmatprep.subr.bf16.mxu0 0
        %427 = vmatpush1.bf16.msra.mxu0 %v410
        %428 = vmatprep.subr.bf16.mxu0 0
        %429 = vmatpush1.bf16.msra.mxu0 %v411
        %430 = vmatprep.subr.bf16.mxu0 0
        %431 = vmatpush1.bf16.msra.mxu0 %v412
        %432 = vmatprep.subr.bf16.mxu0 0
        %433 = vmatpush1.bf16.msra.mxu0 %v413
        %434 = vmatprep.subr.bf16.mxu0 0
        %435 = vmatpush1.bf16.msra.mxu0 %v414
        %436 = vmatprep.subr.bf16.mxu0 0
        %437 = vmatpush1.bf16.msra.mxu0 %v415
        %438 = vmatprep.subr.bf16.mxu0 0
        %439 = vmatpush1.bf16.msra.mxu0 %v416
        %440 = vmatprep.subr.bf16.mxu0 0
        %441 = vmatpush1.bf16.msra.mxu0 %v417
        %442 = vmatprep.subr.bf16.mxu0 0
        %443 = vmatpush1.bf16.msra.mxu0 0
        %444 = vmatprep.subr.bf16.mxu0 0
        %445 = vmatpush1.bf16.msra.mxu0 0
        %446 = vmatprep.subr.bf16.mxu0 0
        %447 = vmatpush1.bf16.msra.mxu0 0
        %448 = vmatprep.subr.bf16.mxu0 0
        %449 = vmatpush1.bf16.msra.mxu0 0
        %450 = vmatprep.subr.bf16.mxu0 0
        %451 = vmatpush1.bf16.msra.mxu0 0
        %452 = vmatprep.subr.bf16.mxu0 0
        %453 = vmatpush1.bf16.msra.mxu0 0
        %454 = vmatprep.subr.bf16.mxu0 0
        %455 = vmatpush1.bf16.msra.mxu0 0
        %456 = vmatprep.subr.bf16.mxu0 0
        %457 = vmatpush1.bf16.msra.mxu0 0
        %458 = vmatprep.mubr.bf16.mxu0 0
        %459 = vmatmul.mubr.bf16.gmra.mrb[0].mxu0 %v372
        %v460 = vpop.f32.mrb[0].mxu0
        %v461 = vadd.f32 %v377, %v460
        %v462 = vpop.f32.mrb[0].mxu0
        %v463 = vpop.f32.mrb[0].mxu0
        %v464 = vadd.f32 %v377, %v463
        %v465 = vpop.f32.mrb[0].mxu0
        %466 = vmatprep.mubr.bf16.mxu0 0
        %467 = vmatmul.mubr.bf16.gmra.mrb[0].mxu0 %v373
        %v468 = vpop.f32.mrb[0].mxu0
        %v469 = vadd.f32 %v377, %v468
        %v470 = vpop.f32.mrb[0].mxu0
        %v471 = vpop.f32.mrb[0].mxu0
        %v472 = vadd.f32 %v377, %v471
        %v473 = vpop.f32.mrb[0].mxu0
        %474 = vdwg.mxu0
        %vm475 = vcmp.gt.f32.partialorder %v461, 0.0
        %vm476 = vcmp.gt.f32.partialorder %v464, 0.0
        %vm477 = vcmp.gt.f32.partialorder %v469, 0.0
        %vm478 = vcmp.gt.f32.partialorder %v472, 0.0
        %v479 = vmul.f32 %v461, 0.01
        %v480 = vmul.f32 %v464, 0.01
        %v481 = vmul.f32 %v469, 0.01
        %v482 = vmul.f32 %v472, 0.01
        %v483 = vsel %vm475, %v461, %v479
        %v484 = vsel %vm476, %v464, %v480
        %v485 = vsel %vm477, %v469, %v481
        %v486 = vsel %vm478, %v472, %v482
        %v487 = vld [vmem:[#allocation5 + $0x80] sm:$0xf]
        %v488 = vld [vmem:[#allocation5 + $0x84] sm:$0xf]
        %v489 = vld [vmem:[#allocation5 + $0x88] sm:$0xf]
        %v490 = vld [vmem:[#allocation5 + $0x8c] sm:$0xf]
        %v491 = vld [vmem:[#allocation5 + $0x90] sm:$0xf]
        %v492 = vld [vmem:[#allocation5 + $0x94] sm:$0xf]
        %v493 = vld [vmem:[#allocation5 + $0x98] sm:$0xf]
        %v494 = vld [vmem:[#allocation5 + $0x9c] sm:$0xf]
        %v495 = vld [vmem:[#allocation7 + $0x2] sm:$0x1]
        %v496 = vpack.c.bf16 %v484, %v483
        %v497 = vpack.c.bf16 %v486, %v485
        %v498 = vlaneseq
        %v499 = vshrl.u32 %v498, 7
        %v500 = vsub.s32 0, %v499
        %v501 = vrot.slane %v495, %v500
        %v510 = vunpack.c.l.b16 %v487
        %v511 = vunpack.c.l.b16 %v488
        %v512 = vunpack.c.l.b16 %v489
        %v513 = vunpack.c.l.b16 %v490
        %v514 = vunpack.c.l.b16 %v491
        %v515 = vunpack.c.l.b16 %v492
        %v516 = vunpack.c.l.b16 %v493
        %v517 = vunpack.c.l.b16 %v494
        %v518 = vpack.c.b16 %v511, %v510
        %v519 = vpack.c.b16 %v513, %v512
        %v520 = vpack.c.b16 %v515, %v514
        %v521 = vpack.c.b16 %v517, %v516
        %vm526 = vcmask 523264
        %v528 = vsel %vm526, %v496, 0
        %v531 = vsel %vm526, %v497, 0
        %533 = vmatprep.subr.bf16.mxu0 0
        %534 = vmatpush1.bf16.msra.mxu0 %v518
        %535 = vmatprep.subr.bf16.mxu0 0
        %536 = vmatpush1.bf16.msra.mxu0 %v519
        %537 = vmatprep.subr.bf16.mxu0 0
        %538 = vmatpush1.bf16.msra.mxu0 %v520
        %539 = vmatprep.subr.bf16.mxu0 0
        %540 = vmatpush1.bf16.msra.mxu0 %v521
        %541 = vmatprep.subr.bf16.mxu0 0
        %542 = vmatpush1.bf16.msra.mxu0 0
        %543 = vmatprep.subr.bf16.mxu0 0
        %544 = vmatpush1.bf16.msra.mxu0 0
        %545 = vmatprep.subr.bf16.mxu0 0
        %546 = vmatpush1.bf16.msra.mxu0 0
        %547 = vmatprep.subr.bf16.mxu0 0
        %548 = vmatpush1.bf16.msra.mxu0 0
        %549 = vmatprep.subr.bf16.mxu0 0
        %550 = vmatpush1.bf16.msra.mxu0 0
        %551 = vmatprep.subr.bf16.mxu0 0
        %552 = vmatpush1.bf16.msra.mxu0 0
        %553 = vmatprep.subr.bf16.mxu0 0
        %554 = vmatpush1.bf16.msra.mxu0 0
        %555 = vmatprep.subr.bf16.mxu0 0
        %556 = vmatpush1.bf16.msra.mxu0 0
        %557 = vmatprep.subr.bf16.mxu0 0
        %558 = vmatpush1.bf16.msra.mxu0 0
        %559 = vmatprep.subr.bf16.mxu0 0
        %560 = vmatpush1.bf16.msra.mxu0 0
        %561 = vmatprep.subr.bf16.mxu0 0
        %562 = vmatpush1.bf16.msra.mxu0 0
        %563 = vmatprep.subr.bf16.mxu0 0
        %564 = vmatpush1.bf16.msra.mxu0 0
        %565 = vmatprep.mubr.bf16.mxu0 0
        %566 = vmatmul.mubr.bf16.gmra.mrb[0].mxu0 %v528
        %v567 = vpop.f32.mrb[0].mxu0
        %v568 = vadd.f32 %v501, %v567
        %v569 = vpop.f32.mrb[0].mxu0
        %v570 = vpop.f32.mrb[0].mxu0
        %v571 = vadd.f32 %v501, %v570
        %v572 = vpop.f32.mrb[0].mxu0
        %573 = vmatprep.mubr.bf16.mxu0 0
        %574 = vmatmul.mubr.bf16.gmra.mrb[0].mxu0 %v531
        %v575 = vpop.f32.mrb[0].mxu0
        %v576 = vadd.f32 %v501, %v575
        %v577 = vpop.f32.mrb[0].mxu0
        %v578 = vpop.f32.mrb[0].mxu0
        %v579 = vadd.f32 %v501, %v578
        %v580 = vpop.f32.mrb[0].mxu0
        %581 = vdwg.mxu0
        %vm582 = vcmp.gt.f32.partialorder %v568, 0.0
        %vm583 = vcmp.gt.f32.partialorder %v571, 0.0
        %vm584 = vcmp.gt.f32.partialorder %v576, 0.0
        %vm585 = vcmp.gt.f32.partialorder %v579, 0.0
        %v586 = vmul.f32 %v568, 0.01
        %v587 = vmul.f32 %v571, 0.01
        %v588 = vmul.f32 %v576, 0.01
        %v589 = vmul.f32 %v579, 0.01
        %v590 = vsel %vm582, %v568, %v586
        %v591 = vsel %vm583, %v571, %v587
        %v592 = vsel %vm584, %v576, %v588
        %v593 = vsel %vm585, %v579, %v589
        %v594 = vld [vmem:[#allocation5 + $0xa0] sm:$0xf]
        %v595 = vld [vmem:[#allocation5 + $0xa4] sm:$0xf]
        %v596 = vld [vmem:[#allocation5 + $0xa8] sm:$0xf]
        %v597 = vld [vmem:[#allocation5 + $0xac] sm:$0xf]
        %v598 = vld [vmem:[#allocation7 + $0x3] sm:$0x1]
        %v599 = vpack.c.bf16 %v591, %v590
        %v600 = vpack.c.bf16 %v593, %v592
        %v601 = vlaneseq
        %v602 = vshrl.u32 %v601, 7
        %v603 = vsub.s32 0, %v602
        %v604 = vrot.slane %v598, %v603
        %v609 = vunpack.c.l.b16 %v594
        %v610 = vunpack.c.l.b16 %v595
        %v611 = vunpack.c.l.b16 %v596
        %v612 = vunpack.c.l.b16 %v597
        %v613 = vpack.c.b16 %v610, %v609
        %v614 = vpack.c.b16 %v612, %v611
        %vm617 = vcmask 261120
        %v619 = vsel %vm617, %v599, 0
        %v622 = vsel %vm617, %v600, 0
        %624 = vmatprep.subr.bf16.mxu0 0
        %625 = vmatpush1.bf16.msra.mxu0 %v613
        %626 = vmatprep.subr.bf16.mxu0 0
        %627 = vmatpush1.bf16.msra.mxu0 %v614
        %628 = vmatprep.subr.bf16.mxu0 0
        %629 = vmatpush1.bf16.msra.mxu0 0
        %630 = vmatprep.subr.bf16.mxu0 0
        %631 = vmatpush1.bf16.msra.mxu0 0
        %632 = vmatprep.subr.bf16.mxu0 0
        %633 = vmatpush1.bf16.msra.mxu0 0
        %634 = vmatprep.subr.bf16.mxu0 0
        %635 = vmatpush1.bf16.msra.mxu0 0
        %636 = vmatprep.subr.bf16.mxu0 0
        %637 = vmatpush1.bf16.msra.mxu0 0
        %638 = vmatprep.subr.bf16.mxu0 0
        %639 = vmatpush1.bf16.msra.mxu0 0
        %640 = vmatprep.subr.bf16.mxu0 0
        %641 = vmatpush1.bf16.msra.mxu0 0
        %642 = vmatprep.subr.bf16.mxu0 0
        %643 = vmatpush1.bf16.msra.mxu0 0
        %644 = vmatprep.subr.bf16.mxu0 0
        %645 = vmatpush1.bf16.msra.mxu0 0
        %646 = vmatprep.subr.bf16.mxu0 0
        %647 = vmatpush1.bf16.msra.mxu0 0
        %648 = vmatprep.subr.bf16.mxu0 0
        %649 = vmatpush1.bf16.msra.mxu0 0
        %650 = vmatprep.subr.bf16.mxu0 0
        %651 = vmatpush1.bf16.msra.mxu0 0
        %652 = vmatprep.subr.bf16.mxu0 0
        %653 = vmatpush1.bf16.msra.mxu0 0
        %654 = vmatprep.subr.bf16.mxu0 0
        %655 = vmatpush1.bf16.msra.mxu0 0
        %656 = vmatprep.mubr.bf16.mxu0 0
        %657 = vmatmul.mubr.bf16.gmra.mrb[0].mxu0 %v619
        %v658 = vpop.f32.mrb[0].mxu0
        %v659 = vadd.f32 %v604, %v658
        %v660 = vpop.f32.mrb[0].mxu0
        %v661 = vpop.f32.mrb[0].mxu0
        %v662 = vadd.f32 %v604, %v661
        %v663 = vpop.f32.mrb[0].mxu0
        %664 = vmatprep.mubr.bf16.mxu0 0
        %665 = vmatmul.mubr.bf16.gmra.mrb[0].mxu0 %v622
        %v666 = vpop.f32.mrb[0].mxu0
        %v667 = vadd.f32 %v604, %v666
        %v668 = vpop.f32.mrb[0].mxu0
        %v669 = vpop.f32.mrb[0].mxu0
        %v670 = vadd.f32 %v604, %v669
        %v671 = vpop.f32.mrb[0].mxu0
        %672 = vdwg.mxu0
        %vm673 = vcmp.gt.f32.partialorder %v659, 0.0
        %vm674 = vcmp.gt.f32.partialorder %v662, 0.0
        %vm675 = vcmp.gt.f32.partialorder %v667, 0.0
        %vm676 = vcmp.gt.f32.partialorder %v670, 0.0
        %v677 = vmul.f32 %v659, 0.01
        %v678 = vmul.f32 %v662, 0.01
        %v679 = vmul.f32 %v667, 0.01
        %v680 = vmul.f32 %v670, 0.01
        %v681 = vsel %vm673, %v659, %v677
        %v682 = vsel %vm674, %v662, %v678
        %v683 = vsel %vm675, %v667, %v679
        %v684 = vsel %vm676, %v670, %v680
        %v685 = vld [vmem:[#allocation5 + $0xb0] sm:$0xf]
        %v686 = vld [vmem:[#allocation5 + $0xb4] sm:$0xf]
        %v687 = vld [vmem:[#allocation5 + $0xb8] sm:$0xf]
        %v688 = vld [vmem:[#allocation5 + $0xbc] sm:$0xf]
        %v689 = vld [vmem:[#allocation7 + $0x4] sm:$0x1]
        %v690 = vpack.c.bf16 %v682, %v681
        %v691 = vpack.c.bf16 %v684, %v683
        %v692 = vlaneseq
        %v693 = vshrl.u32 %v692, 7
        %v694 = vsub.s32 0, %v693
        %v695 = vrot.slane %v689, %v694
        %v700 = vunpack.c.l.b16 %v685
        %v701 = vunpack.c.l.b16 %v686
        %v702 = vunpack.c.l.b16 %v687
        %v703 = vunpack.c.l.b16 %v688
        %v704 = vpack.c.b16 %v701, %v700
        %v705 = vpack.c.b16 %v703, %v702
        %v709 = vsel %vm617, %v690, 0
        %v712 = vsel %vm617, %v691, 0
        %714 = vmatprep.subr.bf16.mxu0 0
        %715 = vmatpush1.bf16.msra.mxu0 %v704
        %716 = vmatprep.subr.bf16.mxu0 0
        %717 = vmatpush1.bf16.msra.mxu0 %v705
        %718 = vmatprep.subr.bf16.mxu0 0
        %719 = vmatpush1.bf16.msra.mxu0 0
        %720 = vmatprep.subr.bf16.mxu0 0
        %721 = vmatpush1.bf16.msra.mxu0 0
        %722 = vmatprep.subr.bf16.mxu0 0
        %723 = vmatpush1.bf16.msra.mxu0 0
        %724 = vmatprep.subr.bf16.mxu0 0
        %725 = vmatpush1.bf16.msra.mxu0 0
        %726 = vmatprep.subr.bf16.mxu0 0
        %727 = vmatpush1.bf16.msra.mxu0 0
        %728 = vmatprep.subr.bf16.mxu0 0
        %729 = vmatpush1.bf16.msra.mxu0 0
        %730 = vmatprep.subr.bf16.mxu0 0
        %731 = vmatpush1.bf16.msra.mxu0 0
        %732 = vmatprep.subr.bf16.mxu0 0
        %733 = vmatpush1.bf16.msra.mxu0 0
        %734 = vmatprep.subr.bf16.mxu0 0
        %735 = vmatpush1.bf16.msra.mxu0 0
        %736 = vmatprep.subr.bf16.mxu0 0
        %737 = vmatpush1.bf16.msra.mxu0 0
        %738 = vmatprep.subr.bf16.mxu0 0
        %739 = vmatpush1.bf16.msra.mxu0 0
        %740 = vmatprep.subr.bf16.mxu0 0
        %741 = vmatpush1.bf16.msra.mxu0 0
        %742 = vmatprep.subr.bf16.mxu0 0
        %743 = vmatpush1.bf16.msra.mxu0 0
        %744 = vmatprep.subr.bf16.mxu0 0
        %745 = vmatpush1.bf16.msra.mxu0 0
        %746 = vmatprep.mubr.bf16.mxu0 0
        %747 = vmatmul.mubr.bf16.gmra.mrb[0].mxu0 %v709
        %v748 = vpop.f32.mrb[0].mxu0
        %v749 = vadd.f32 %v695, %v748
        %v750 = vpop.f32.mrb[0].mxu0
        %v751 = vpop.f32.mrb[0].mxu0
        %v752 = vadd.f32 %v695, %v751
        %v753 = vpop.f32.mrb[0].mxu0
        %754 = vmatprep.mubr.bf16.mxu0 0
        %755 = vmatmul.mubr.bf16.gmra.mrb[0].mxu0 %v712
        %v756 = vpop.f32.mrb[0].mxu0
        %v757 = vadd.f32 %v695, %v756
        %v758 = vpop.f32.mrb[0].mxu0
        %v759 = vpop.f32.mrb[0].mxu0
        %v760 = vadd.f32 %v695, %v759
        %v761 = vpop.f32.mrb[0].mxu0
        %762 = vdwg.mxu0
        %vm763 = vcmp.gt.f32.partialorder %v749, 0.0
        %vm764 = vcmp.gt.f32.partialorder %v752, 0.0
        %vm765 = vcmp.gt.f32.partialorder %v757, 0.0
        %vm766 = vcmp.gt.f32.partialorder %v760, 0.0
        %v767 = vmul.f32 %v749, 0.01
        %v768 = vmul.f32 %v752, 0.01
        %v769 = vmul.f32 %v757, 0.01
        %v770 = vmul.f32 %v760, 0.01
        %v771 = vsel %vm763, %v749, %v767
        %v772 = vsel %vm764, %v752, %v768
        %v773 = vsel %vm765, %v757, %v769
        %v774 = vsel %vm766, %v760, %v770
        %v775 = vld [vmem:[#allocation5 + $0xc0] sm:$0xf]
        %v776 = vld [vmem:[#allocation5 + $0xc4] sm:$0xf]
        %v777 = vld [vmem:[#allocation5 + $0xc8] sm:$0xf]
        %v778 = vld [vmem:[#allocation5 + $0xcc] sm:$0xf]
        %v779 = vld [vmem:[#allocation5 + $0xd0] sm:$0xf]
        %v780 = vld [vmem:[#allocation5 + $0xd4] sm:$0xf]
        %v781 = vld [vmem:[#allocation5 + $0xd8] sm:$0xf]
        %v782 = vld [vmem:[#allocation5 + $0xdc] sm:$0xf]
        %v783 = vld [vmem:[#allocation7 + $0x5] sm:$0x1]
        %v784 = vpack.c.bf16 %v772, %v771
        %v785 = vpack.c.bf16 %v774, %v773
        %v786 = vlaneseq
        %v787 = vshrl.u32 %v786, 7
        %v788 = vsub.s32 0, %v787
        %v789 = vrot.slane %v783, %v788
        %v798 = vunpack.c.l.b16 %v775
        %v799 = vunpack.c.l.b16 %v776
        %v800 = vunpack.c.l.b16 %v777
        %v801 = vunpack.c.l.b16 %v778
        %v802 = vunpack.c.l.b16 %v779
        %v803 = vunpack.c.l.b16 %v780
        %v804 = vunpack.c.l.b16 %v781
        %v805 = vunpack.c.l.b16 %v782
        %v806 = vpack.c.b16 %v799, %v798
        %v807 = vpack.c.b16 %v801, %v800
        %v808 = vpack.c.b16 %v803, %v802
        %v809 = vpack.c.b16 %v805, %v804
        %v815 = vsel %vm526, %v784, 0
        %v818 = vsel %vm526, %v785, 0
        %820 = vmatprep.subr.bf16.mxu0 0
        %821 = vmatpush1.bf16.msra.mxu0 %v806
        %822 = vmatprep.subr.bf16.mxu0 0
        %823 = vmatpush1.bf16.msra.mxu0 %v807
        %824 = vmatprep.subr.bf16.mxu0 0
        %825 = vmatpush1.bf16.msra.mxu0 %v808
        %826 = vmatprep.subr.bf16.mxu0 0
        %827 = vmatpush1.bf16.msra.mxu0 %v809
        %828 = vmatprep.subr.bf16.mxu0 0
        %829 = vmatpush1.bf16.msra.mxu0 0
        %830 = vmatprep.subr.bf16.mxu0 0
        %831 = vmatpush1.bf16.msra.mxu0 0
        %832 = vmatprep.subr.bf16.mxu0 0
        %833 = vmatpush1.bf16.msra.mxu0 0
        %834 = vmatprep.subr.bf16.mxu0 0
        %835 = vmatpush1.bf16.msra.mxu0 0
        %836 = vmatprep.subr.bf16.mxu0 0
        %837 = vmatpush1.bf16.msra.mxu0 0
        %838 = vmatprep.subr.bf16.mxu0 0
        %839 = vmatpush1.bf16.msra.mxu0 0
        %840 = vmatprep.subr.bf16.mxu0 0
        %841 = vmatpush1.bf16.msra.mxu0 0
        %842 = vmatprep.subr.bf16.mxu0 0
        %843 = vmatpush1.bf16.msra.mxu0 0
        %844 = vmatprep.subr.bf16.mxu0 0
        %845 = vmatpush1.bf16.msra.mxu0 0
        %846 = vmatprep.subr.bf16.mxu0 0
        %847 = vmatpush1.bf16.msra.mxu0 0
        %848 = vmatprep.subr.bf16.mxu0 0
        %849 = vmatpush1.bf16.msra.mxu0 0
        %850 = vmatprep.subr.bf16.mxu0 0
        %851 = vmatpush1.bf16.msra.mxu0 0
        %852 = vmatprep.mubr.bf16.mxu0 0
        %853 = vmatmul.mubr.bf16.gmra.mrb[0].mxu0 %v815
        %v854 = vpop.f32.mrb[0].mxu0
        %v855 = vadd.f32 %v789, %v854
        %v856 = vpop.f32.mrb[0].mxu0
        %v857 = vpop.f32.mrb[0].mxu0
        %v858 = vadd.f32 %v789, %v857
        %v859 = vpop.f32.mrb[0].mxu0
        %860 = vmatprep.mubr.bf16.mxu0 0
        %861 = vmatmul.mubr.bf16.gmra.mrb[0].mxu0 %v818
        %v862 = vpop.f32.mrb[0].mxu0
        %v863 = vadd.f32 %v789, %v862
        %v864 = vpop.f32.mrb[0].mxu0
        %v865 = vpop.f32.mrb[0].mxu0
        %v866 = vadd.f32 %v789, %v865
        %v867 = vpop.f32.mrb[0].mxu0
        %868 = vdwg.mxu0
        %vm869 = vcmp.gt.f32.partialorder %v855, 0.0
        %vm870 = vcmp.gt.f32.partialorder %v858, 0.0
        %vm871 = vcmp.gt.f32.partialorder %v863, 0.0
        %vm872 = vcmp.gt.f32.partialorder %v866, 0.0
        %v873 = vmul.f32 %v855, 0.01
        %v874 = vmul.f32 %v858, 0.01
        %v875 = vmul.f32 %v863, 0.01
        %v876 = vmul.f32 %v866, 0.01
        %v877 = vsel %vm869, %v855, %v873
        %v878 = vsel %vm870, %v858, %v874
        %v879 = vsel %vm871, %v863, %v875
        %v880 = vsel %vm872, %v866, %v876
        %v881 = vld [vmem:[#allocation5 + $0xe0] sm:$0xf]
        %v882 = vld [vmem:[#allocation5 + $0xe4] sm:$0xf]
        %v883 = vld [vmem:[#allocation5 + $0xe8] sm:$0xf]
        %v884 = vld [vmem:[#allocation5 + $0xec] sm:$0xf]
        %v885 = vld [vmem:[#allocation5 + $0xf0] sm:$0xf]
        %v886 = vld [vmem:[#allocation5 + $0xf4] sm:$0xf]
        %v887 = vld [vmem:[#allocation5 + $0xf8] sm:$0xf]
        %v888 = vld [vmem:[#allocation5 + $0xfc] sm:$0xf]
        %v889 = vld [vmem:[#allocation5 + $0x100] sm:$0xf]
        %v890 = vld [vmem:[#allocation5 + $0x104] sm:$0xf]
        %v891 = vld [vmem:[#allocation5 + $0x108] sm:$0xf]
        %v892 = vld [vmem:[#allocation5 + $0x10c] sm:$0xf]
        %v893 = vld [vmem:[#allocation5 + $0x110] sm:$0xf]
        %v894 = vld [vmem:[#allocation5 + $0x114] sm:$0xf]
        %v895 = vld [vmem:[#allocation5 + $0x118] sm:$0xf]
        %v896 = vld [vmem:[#allocation5 + $0x11c] sm:$0xf]
        %v897 = vld [vmem:[#allocation7 + $0x6] sm:$0x1]
        %v898 = vpack.c.bf16 %v878, %v877
        %v899 = vpack.c.bf16 %v880, %v879
        %v900 = vlaneseq
        %v901 = vshrl.u32 %v900, 7
        %v902 = vsub.s32 0, %v901
        %v903 = vrot.slane %v897, %v902
        %v920 = vunpack.c.l.b16 %v881
        %v921 = vunpack.c.l.b16 %v882
        %v922 = vunpack.c.l.b16 %v883
        %v923 = vunpack.c.l.b16 %v884
        %v924 = vunpack.c.l.b16 %v885
        %v925 = vunpack.c.l.b16 %v886
        %v926 = vunpack.c.l.b16 %v887
        %v927 = vunpack.c.l.b16 %v888
        %v928 = vunpack.c.l.b16 %v889
        %v929 = vunpack.c.l.b16 %v890
        %v930 = vunpack.c.l.b16 %v891
        %v931 = vunpack.c.l.b16 %v892
        %v932 = vunpack.c.l.b16 %v893
        %v933 = vunpack.c.l.b16 %v894
        %v934 = vunpack.c.l.b16 %v895
        %v935 = vunpack.c.l.b16 %v896
        %v936 = vpack.c.b16 %v921, %v920
        %v937 = vpack.c.b16 %v923, %v922
        %v938 = vpack.c.b16 %v925, %v924
        %v939 = vpack.c.b16 %v927, %v926
        %v940 = vpack.c.b16 %v929, %v928
        %v941 = vpack.c.b16 %v931, %v930
        %v942 = vpack.c.b16 %v933, %v932
        %v943 = vpack.c.b16 %v935, %v934
        %952 = vmatprep.subr.bf16.mxu0 0
        %953 = vmatpush1.bf16.msra.mxu0 %v936
        %954 = vmatprep.subr.bf16.mxu0 0
        %955 = vmatpush1.bf16.msra.mxu0 %v937
        %956 = vmatprep.subr.bf16.mxu0 0
        %957 = vmatpush1.bf16.msra.mxu0 %v938
        %958 = vmatprep.subr.bf16.mxu0 0
        %959 = vmatpush1.bf16.msra.mxu0 %v939
        %960 = vmatprep.subr.bf16.mxu0 0
        %961 = vmatpush1.bf16.msra.mxu0 %v940
        %962 = vmatprep.subr.bf16.mxu0 0
        %963 = vmatpush1.bf16.msra.mxu0 %v941
        %964 = vmatprep.subr.bf16.mxu0 0
        %965 = vmatpush1.bf16.msra.mxu0 %v942
        %966 = vmatprep.subr.bf16.mxu0 0
        %967 = vmatpush1.bf16.msra.mxu0 %v943
        %968 = vmatprep.subr.bf16.mxu0 0
        %969 = vmatpush1.bf16.msra.mxu0 0
        %970 = vmatprep.subr.bf16.mxu0 0
        %971 = vmatpush1.bf16.msra.mxu0 0
        %972 = vmatprep.subr.bf16.mxu0 0
        %973 = vmatpush1.bf16.msra.mxu0 0
        %974 = vmatprep.subr.bf16.mxu0 0
        %975 = vmatpush1.bf16.msra.mxu0 0
        %976 = vmatprep.subr.bf16.mxu0 0
        %977 = vmatpush1.bf16.msra.mxu0 0
        %978 = vmatprep.subr.bf16.mxu0 0
        %979 = vmatpush1.bf16.msra.mxu0 0
        %980 = vmatprep.subr.bf16.mxu0 0
        %981 = vmatpush1.bf16.msra.mxu0 0
        %982 = vmatprep.subr.bf16.mxu0 0
        %983 = vmatpush1.bf16.msra.mxu0 0
        %984 = vmatprep.mubr.bf16.mxu0 0
        %985 = vmatmul.mubr.bf16.gmra.mrb[0].mxu0 %v898
        %v986 = vpop.f32.mrb[0].mxu0
        %v987 = vadd.f32 %v903, %v986
        %v988 = vpop.f32.mrb[0].mxu0
        %v989 = vpop.f32.mrb[0].mxu0
        %v990 = vadd.f32 %v903, %v989
        %v991 = vpop.f32.mrb[0].mxu0
        %992 = vmatprep.mubr.bf16.mxu0 0
        %993 = vmatmul.mubr.bf16.gmra.mrb[0].mxu0 %v899
        %v994 = vpop.f32.mrb[0].mxu0
        %v995 = vadd.f32 %v903, %v994
        %v996 = vpop.f32.mrb[0].mxu0
        %v997 = vpop.f32.mrb[0].mxu0
        %v998 = vadd.f32 %v903, %v997
        %v999 = vpop.f32.mrb[0].mxu0
        %1000 = vdwg.mxu0
        %1001 = vst [vmem:[%s215] sm:$0xff] %v987
        %1002 = vst [vmem:[%s215 + $0x8] sm:$0xff] %v990
        %1003 = vst [vmem:[%s215 + $0x10] sm:$0xff] %v995
        %1004 = vst [vmem:[%s215 + $0x18] sm:$0xff] %v998
        %s1005 = sand.u32 %s97, 1
        %s1006 = scalar_lea.sflag [#allocation4], %s1005
        %s1007 = sand.u32 %s97, 1
        %s1008 = smul.addr %s1007, 32
        %s1009 = scalar_lea.vmem [#allocation8], %s1008
        // Predicated region
        $region45: #{tpu_custom_call.1} parent=31 // pred_check
          %p1010 = pneg %p107
        $region46: #{tpu_custom_call.1} parent=31 // pred_check_branch
          %1012 = sbr.rel (%p1010) target = $region48
        $region47: #{tpu_custom_call.1} parent=31 // pred_region
          %s1013 = smul.u32 4, %s21
          %s1015 = ssub.s32 512, 512
          %1016 = vsyncadd %s1006, %s1015
          %s1017 = smul.addr %s1013, 128
          %s1018 = scalar_lea.hbm %s3, %s1017
          %s1019 = sshll.u32 %s1009, 4
          %s1020 = int_to_ptr.vmem [resolvable:$true] %s1019
          %1025 = dma.vmem_to_hbm [thread:$0]  %s1020, 512, %s1018, %s1006, 128, 128, 8
        $region48: #{tpu_custom_call.1} parent=31 // pred_fallthru
          _
      $region32: #{tpu_custom_call.1} parent=5 // pred_fallthru
        _
      %p1026 = scmp.le.s32.totalorder 2, %s16
      // Predicated region
      $region49: #{tpu_custom_call.1} parent=5 // pred_check
        %p1027 = pneg %p1026
      $region50: #{tpu_custom_call.1} parent=5 // pred_check_branch
        %1029 = sbr.rel (%p1027) target = $region52
      $region51: #{tpu_custom_call.1} parent=5 // pred_region
        %s1030 = ssub.s32 %s16, 2
        // Predicated region
        $region53: #{tpu_custom_call.1} parent=51 // pred_check
          %p1031 = pneg %p113
        $region54: #{tpu_custom_call.1} parent=51 // pred_check_branch
          %1033 = sbr.rel (%p1031) target = $region56
        $region55: #{tpu_custom_call.1} parent=51 // pred_region
          %s1034 = sand.u32 %s98, 1
          %s1035 = scalar_lea.sflag [#allocation4], %s1034
          %s1036 = sand.u32 %s98, 1
          %s1037 = smul.addr %s1036, 32
          %s1038 = scalar_lea.vmem [#allocation8], %s1037
          %1039 = dma.done %s1035, 512
        $region56: #{tpu_custom_call.1} parent=51 // pred_fallthru
          _
      $region52: #{tpu_custom_call.1} parent=5 // pred_fallthru
        _
    $region6: #{tpu_custom_call.1} parent=1 // loop_footer
      %s20 = sadd.s32 1, %s16
    $region7: #{tpu_custom_call.1} parent=1 // loop_footer_branch
      %15 = sbr.rel target = $region3
    $region8: #{tpu_custom_call.1} parent=1 // loop_exit
      _
    %1040 = vsyncpa [#allocation3], 1
    %s1041 = scalar_lea.sflag [#allocation3], 1
    %1042 = vsyncpa %s1041, 1
    %1043 = vsyncpa [#allocation6], 1
    %1044 = vsyncpa [#allocation4], 1
    %s1045 = scalar_lea.sflag [#allocation4], 1
    %1046 = vsyncpa %s1045, 1

</llo_original>
